<compile_context>
chip_gen: v7x
topology: tpu7x:2x2x1
jax: 0.10.0
libtpu: 0.0.40
codegen_flags: <defaults>
</compile_context>

<pallas_src>
import functools

import jax
import jax.numpy as jnp
from jax.experimental import pallas as pl
from jax.experimental.pallas import tpu as pltpu


def _round_up(x: int, m: int) -> int:
    return ((x + m - 1) // m) * m


def _embed_kernel(idx_ref, table_ref, out_ref, *, nc_chunk: int):
    # idx_ref:   (TB, 1)  int32 -- class ids for this output tile. Rows past
    #            `batch` in the ragged last block hold unspecified values, but
    #            their output rows are masked on store, so they are harmless.
    # table_ref: (NC, H)        -- full embedding table (single VMEM buffer).
    # out_ref:   (TB, H)        -- gathered rows.
    num_classes = table_ref.shape[0]
    tb, hidden = out_ref.shape
    idx = idx_ref[...]                                               # (TB, 1)

    # One-hot gather on the MXU, chunked over the class axis to bound the
    # (TB, chunk) one-hot intermediate's vreg/VMEM pressure.
    acc = jnp.zeros((tb, hidden), jnp.float32)
    for start in range(0, num_classes, nc_chunk):
        size = min(nc_chunk, num_classes - start)
        classes = start + jax.lax.broadcasted_iota(jnp.int32, (tb, size), 1)
        one_hot = (idx == classes).astype(table_ref.dtype)           # (TB, size)
        acc = acc + jnp.dot(one_hot, table_ref[start:start + size, :],
                            preferred_element_type=jnp.float32)      # (TB, H)
    out_ref[...] = acc.astype(out_ref.dtype)


def class_embed(table: jax.Array, idx: jax.Array, *,
                tile_batch: int | None = None, nc_chunk: int = 512) -> jax.Array:
    """Pallas embedding lookup: returns table[idx] with shape [batch, hidden]."""
    num_classes, hidden = table.shape
    (batch,) = idx.shape
    idx2d = idx.astype(jnp.int32).reshape(batch, 1)

    # ---- batch tile ------------------------------------------------------
    # Big tiles amortize per-step overhead (memory-bound); capped so that a
    # large batch still yields >= 2 tiles for megacore sharding on v7x.
    if tile_batch is None:
        tile_batch = 1024 if hidden <= 256 else 256
    tb = min(tile_batch, _round_up(batch, 8))
    if batch >= 16:
        tb = min(tb, _round_up(pl.cdiv(batch, 2), 8))
    tb = max(8, _round_up(tb, 8))
    grid = (pl.cdiv(batch, tb),)          # ragged final block masked by Pallas

    # ---- VMEM budget -------------------------------------------------------
    itemsize = jnp.dtype(table.dtype).itemsize
    table_bytes = num_classes * hidden * itemsize          # Buffered(1): 1 copy
    out_bytes = 2 * tb * hidden * itemsize                 # double-buffered out
    idx_bytes = 2 * tb * 128 * 4                           # lane-padded idx tiles
    scratch_bytes = tb * (min(nc_chunk, num_classes) + hidden) * 4  # one-hot + acc
    vmem_estimate = table_bytes + out_bytes + idx_bytes + scratch_bytes
    vmem_limit = None
    if vmem_estimate > 30 * 1024 * 1024:
        # Raise the scoped-VMEM limit instead of shrinking tiles (fine on
        # v5e/v6e with 128 MiB physical VMEM).
        # TODO(synk): for tables too large even for a raised limit (v7x has
        # only 64 MiB physical VMEM) switch to an HBM-resident table with a
        # chunked-K streaming / scalar-prefetch row-gather fallback.
        vmem_limit = min(int(vmem_estimate * 1.25) + (4 << 20), 100 * 1024 * 1024)

    kernel = functools.partial(_embed_kernel, nc_chunk=nc_chunk)

    return pl.pallas_call(
        kernel,
        grid=grid,
        in_specs=[
            # TB class ids per step (8-sublane tiled, lane dim equals full 1).
            pl.BlockSpec((tb, 1), lambda i: (i, 0)),
            # Whole table, constant block index -> one bulk DMA; single buffer.
            pl.BlockSpec((num_classes, hidden), lambda i: (0, 0),
                         pipeline_mode=pl.Buffered(1)),
        ],
        out_specs=pl.BlockSpec((tb, hidden), lambda i: (i, 0)),
        out_shape=jax.ShapeDtypeStruct((batch, hidden), table.dtype),
        compiler_params=pltpu.CompilerParams(
            dimension_semantics=("parallel",),   # disjoint output tiles
            vmem_limit_bytes=vmem_limit,
        ),
    )(idx2d, table)


if __name__ == "__main__":
    key = jax.random.PRNGKey(0)
    k_table, k_idx = jax.random.split(key)

    num_classes = 16   # synthetic class vocabulary
    hidden = 128       # CLIP-style hidden dim (lane-aligned)
    batch = 8

    # TODO(synk): the CLIP tokenizer / CLIPTextModel forward that produces the
    # table in __init__ has no Pallas equivalent; the table is synthesized here.
    table = jax.random.normal(k_table, (num_classes, hidden), dtype=jnp.float32)

    # Class indices `c` (forward does c.to(int)).
    c = jax.random.randint(k_idx, (batch,), 0, num_classes, dtype=jnp.int32)

    out = jax.block_until_ready(class_embed(table, c))
    ref = table[c]
    assert out.shape == (batch, hidden), out.shape
    assert out.dtype == table.dtype, out.dtype
    assert jnp.allclose(out, ref), "mismatch vs reference gather"

    # Ragged tail (batch not a multiple of 8): handled by cdiv grid + masked
    # final block, with no wrapper-side pad or output slice.
    c_tail = c[:5]
    out_tail = jax.block_until_ready(class_embed(table, c_tail))
    assert out_tail.shape == (5, hidden), out_tail.shape
    assert jnp.allclose(out_tail, table[c_tail]), "mismatch on ragged tail"

    # Larger batch: multiple grid steps (>=2 tiles, megacore-shardable).
    c_big = jax.random.randint(jax.random.PRNGKey(1), (40,), 0, num_classes,
                               dtype=jnp.int32)
    out_big = jax.block_until_ready(class_embed(table, c_big))
    assert out_big.shape == (40, hidden), out_big.shape
    assert jnp.allclose(out_big, table[c_big]), "mismatch on multi-tile batch"

    print("KERNEL_OK")
</pallas_src>

<mosaic_0001>
module attributes {stable_mosaic.version = 11 : i64} {
  func.func @_embed_kernel(%arg0: i32, %arg1: memref<8x1xi32, #tpu.memory_space<vmem>>, %arg2: memref<16x128xf32, #tpu.memory_space<vmem>>, %arg3: memref<8x128xf32, #tpu.memory_space<vmem>>) attributes {dimension_semantics = [#tpu.dimension_semantics<parallel>], iteration_bounds = array<i64: 1>, scalar_prefetch = 0 : i64, scratch_operands = 0 : i64, tpu.core_type = #tpu.core_type<tc>, window_params = [{transform_indices = @transform_0, window_bounds = array<i64: 8, 1>}, {pipeline_mode = #tpu.pipeline_mode<synchronous>, transform_indices = @transform_1, window_bounds = array<i64: 16, 128>}, {transform_indices = @transform_2, window_bounds = array<i64: 8, 128>}]} {
    %c0 = arith.constant 0 : index
    %c0_0 = arith.constant 0 : index
    %0 = vector.load %arg1[%c0, %c0_0] : memref<8x1xi32, #tpu.memory_space<vmem>>, vector<8x1xi32>
    %cst = arith.constant 0.000000e+00 : f32
    %1 = vector.broadcast %cst : f32 to vector<8x128xf32>
    %2 = tpu.iota {dimensions = array<i32: 1>} : vector<8x16xi32>
    %c0_i32 = arith.constant 0 : i32
    %3 = vector.broadcast %c0_i32 : i32 to vector<8x16xi32>
    %4 = arith.addi %3, %2 : vector<8x16xi32>
    %5 = vector.broadcast %0 : vector<8x1xi32> to vector<8x16xi32>
    %6 = arith.cmpi eq, %5, %4 : vector<8x16xi32>
    %7 = arith.extui %6 : vector<8x16xi1> to vector<8x16xi32>
    %8 = arith.sitofp %7 : vector<8x16xi32> to vector<8x16xf32>
    %c0_1 = arith.constant 0 : index
    %c0_2 = arith.constant 0 : index
    %9 = vector.load %arg2[%c0_1, %c0_2] : memref<16x128xf32, #tpu.memory_space<vmem>>, vector<16x128xf32>
    %cst_3 = arith.constant dense<0.000000e+00> : vector<8x128xf32>
    %10 = tpu.matmul %8, %9, %cst_3 {dimension_numbers = #tpu.dot_dimension_numbers<[1], [0], [0], [1], [0, 0, 1, 1], [], []>} : vector<8x16xf32>, vector<16x128xf32>, vector<8x128xf32> -> vector<8x128xf32>
    %11 = arith.addf %1, %10 : vector<8x128xf32>
    %c0_4 = arith.constant 0 : index
    %c0_5 = arith.constant 0 : index
    %12 = vector.load %arg3[%c0_4, %c0_5] : memref<8x128xf32, #tpu.memory_space<vmem>>, vector<8x128xf32>
    tpu.vector_store %arg3[%c0_4, %c0_5], %11 {strides = array<i32>} : memref<8x128xf32, #tpu.memory_space<vmem>>, vector<8x128xf32>,
    return
  }
  func.func @transform_0(%arg0: i32) -> (i32, i32) {
    %c0_i32 = arith.constant 0 : i32
    %c0_i32_0 = arith.constant 0 : i32
    return %arg0, %c0_i32 : i32, i32
  }
  func.func @transform_1(%arg0: i32) -> (i32, i32) {
    %c0_i32 = arith.constant 0 : i32
    %c0_i32_0 = arith.constant 0 : i32
    %c0_i32_1 = arith.constant 0 : i32
    return %c0_i32, %c0_i32_0 : i32, i32
  }
  func.func @transform_2(%arg0: i32) -> (i32, i32) {
    %c0_i32 = arith.constant 0 : i32
    %c0_i32_0 = arith.constant 0 : i32
    return %arg0, %c0_i32 : i32, i32
  }
}

</mosaic_0001>

<llo_original>
// kernel: tpu_custom_call.1
$region0: #{tpu_custom_call.1}
  #allocation0 [shape = 'u32[]', space=smem, size = 0x4, offset = 0x4, fixed_abs, tag = 'smem constant byte address 0x4 - core index']
  #allocation1 [shape = 'u32[144,128]{1,0:T(1,128)}', space=vmem, size = 0x12000, scoped, tag = 'internal scratch']
  %s0 = inlined_call_operand.vmem [shape: s32[8,1], index: 0, kind: input, shape index: {}]
  %s1 = inlined_call_operand.hbm [shape: f32[16,128], index: 1, kind: input, shape index: {}]
  %s2 = inlined_call_operand.hbm [shape: f32[8,128], index: 2, kind: output, shape index: {}]
  %s3 = sld [smem:[#allocation0]]
  $region22: #{tpu_custom_call.1} parent=0
    _
  %s5 = ssub.s32 1, %s3
  %s6 = scalar_select 0, %s5, %s3
  $region1: #{tpu_custom_call.1} parent=0
    #allocation2 [shape = 'u8[8192]{0}', space=vmem, size = 0x2000, scoped, tag = 'input window, operand 1, single buffered']
    #allocation3 [shape = 's32[1]{0}', space=sflag, size = 0x4, scoped, tag = 'scoped memory for tpu_custom_call.1']
    #allocation4 [shape = 's32[1]{0}', space=sflag, size = 0x4, scoped, tag = 'scoped memory for tpu_custom_call.1']
    #allocation5 [shape = 'u8[4096]{0}', space=vmem, size = 0x1000, scoped, tag = 'output window, operand 0, single buffered']
    %7 = vsyncpa [#allocation3], 0
    %8 = vsyncpa [#allocation4], 0
    // Predicated region
    $region2: #{tpu_custom_call.1} parent=1 // pred_check
      _
    $region3: #{tpu_custom_call.1} parent=1 // pred_check_branch
      %10 = sbr.rel (0) target = $region5
    $region4: #{tpu_custom_call.1} parent=1 // pred_region
      _
    $region5: #{tpu_custom_call.1} parent=1 // pred_fallthru
      _
    // Predicated region
    $region6: #{tpu_custom_call.1} parent=1 // pred_check
      _
    $region7: #{tpu_custom_call.1} parent=1 // pred_check_branch
      %12 = sbr.rel (0) target = $region9
    $region8: #{tpu_custom_call.1} parent=1 // pred_region
      %s14 = ssub.s32 256, 256
      %15 = vsyncadd [#allocation3], %s14
      %s16 = sshll.u32 [#allocation2], 4
      %s17 = int_to_ptr.vmem [resolvable:$true] %s16
      %22 = dma.hbm_to_vmem [thread:$0]  %s1, 256, %s17, [#allocation3], 128, 128, 8
    $region9: #{tpu_custom_call.1} parent=1 // pred_fallthru
      _
    // Predicated region
    $region10: #{tpu_custom_call.1} parent=1 // pred_check
      _
    $region11: #{tpu_custom_call.1} parent=1 // pred_check_branch
      %24 = sbr.rel (0) target = $region13
    $region12: #{tpu_custom_call.1} parent=1 // pred_region
      %25 = dma.done [#allocation3], 256
    $region13: #{tpu_custom_call.1} parent=1 // pred_fallthru
      _
    %v26 = vld [vmem:[%s0] sm:$0xff]
    %v27 = vlaneseq
    %v28 = vand.u32 %v27, 127
    %29 = vset.pattern.permute.xlu0 0
    %30 = vperm.xlu0 %29, %v26
    %v31 = vpop.permute.xlu0 %30
    %vm32 = vcmp.eq.s32.totalorder %v31, %v28
    %v33 = vsel %vm32, 1, 0
    %v34 = vcvt.s32.f32 %v33
    %v35 = vld [vmem:[#allocation2] sm:$0xff]
    %v36 = vld [vmem:[#allocation2 + $0x8] sm:$0xff]
    %vm37 = vcmask 130048
    %v39 = vsel %vm37, %v34, 0
    %41 = vmatprep.subr.mxu0 0.0
    %42 = vmatpush1.msra.mxu0 %v35
    %43 = vmatprep.subr.mxu0 0.0
    %44 = vmatpush1.msra.mxu0 %v36
    %45 = vmatprep.subr.mxu0 0.0
    %46 = vmatpush1.msra.mxu0 0.0
    %47 = vmatprep.subr.mxu0 0.0
    %48 = vmatpush1.msra.mxu0 0.0
    %49 = vmatprep.subr.mxu0 0.0
    %50 = vmatpush1.msra.mxu0 0.0
    %51 = vmatprep.subr.mxu0 0.0
    %52 = vmatpush1.msra.mxu0 0.0
    %53 = vmatprep.subr.mxu0 0.0
    %54 = vmatpush1.msra.mxu0 0.0
    %55 = vmatprep.subr.mxu0 0.0
    %56 = vmatpush1.msra.mxu0 0.0
    %57 = vmatprep.subr.mxu0 0.0
    %58 = vmatpush1.msra.mxu0 0.0
    %59 = vmatprep.subr.mxu0 0.0
    %60 = vmatpush1.msra.mxu0 0.0
    %61 = vmatprep.subr.mxu0 0.0
    %62 = vmatpush1.msra.mxu0 0.0
    %63 = vmatprep.subr.mxu0 0.0
    %64 = vmatpush1.msra.mxu0 0.0
    %65 = vmatprep.subr.mxu0 0.0
    %66 = vmatpush1.msra.mxu0 0.0
    %67 = vmatprep.subr.mxu0 0.0
    %68 = vmatpush1.msra.mxu0 0.0
    %69 = vmatprep.subr.mxu0 0.0
    %70 = vmatpush1.msra.mxu0 0.0
    %71 = vmatprep.subr.mxu0 0.0
    %72 = vmatpush1.msra.mxu0 0.0
    %73 = vmatprep.subr.mxu0 0.0
    %74 = vmatpush1.msra.mxu0 0.0
    %75 = vmatprep.subr.mxu0 0.0
    %76 = vmatpush1.msra.mxu0 0.0
    %77 = vmatprep.subr.mxu0 0.0
    %78 = vmatpush1.msra.mxu0 0.0
    %79 = vmatprep.subr.mxu0 0.0
    %80 = vmatpush1.msra.mxu0 0.0
    %81 = vmatprep.subr.mxu0 0.0
    %82 = vmatpush1.msra.mxu0 0.0
    %83 = vmatprep.subr.mxu0 0.0
    %84 = vmatpush1.msra.mxu0 0.0
    %85 = vmatprep.subr.mxu0 0.0
    %86 = vmatpush1.msra.mxu0 0.0
    %87 = vmatprep.subr.mxu0 0.0
    %88 = vmatpush1.msra.mxu0 0.0
    %89 = vmatprep.subr.mxu0 0.0
    %90 = vmatpush1.msra.mxu0 0.0
    %91 = vmatprep.subr.mxu0 0.0
    %92 = vmatpush1.msra.mxu0 0.0
    %93 = vmatprep.subr.mxu0 0.0
    %94 = vmatpush1.msra.mxu0 0.0
    %95 = vmatprep.subr.mxu0 0.0
    %96 = vmatpush1.msra.mxu0 0.0
    %97 = vmatprep.subr.mxu0 0.0
    %98 = vmatpush1.msra.mxu0 0.0
    %99 = vmatprep.subr.mxu0 0.0
    %100 = vmatpush1.msra.mxu0 0.0
    %101 = vmatprep.subr.mxu0 0.0
    %102 = vmatpush1.msra.mxu0 0.0
    %103 = vmatprep.subr.mxu0 0.0
    %104 = vmatpush1.msra.mxu0 0.0
    %105 = vmatprep.mubr.f32.mxu0 0.0
    %106 = vmatmul.mubr.f32.gmra.mrb[0].mxu0 %v39
    %v107 = vpop.f32.mrb[0].mxu0
    %v108 = vadd.f32 0.0, %v107
    %v109 = vpop.f32.mrb[0].mxu0
    %110 = vdwg.mxu0
    %111 = vst [vmem:[#allocation5] sm:$0xff] %v108
    // Predicated region
    $region14: #{tpu_custom_call.1} parent=1 // pred_check
      _
    $region15: #{tpu_custom_call.1} parent=1 // pred_check_branch
      %113 = sbr.rel (0) target = $region17
    $region16: #{tpu_custom_call.1} parent=1 // pred_region
      %s115 = ssub.s32 128, 128
      %116 = vsyncadd [#allocation4], %s115
      %s118 = sshll.u32 [#allocation5], 4
      %s119 = int_to_ptr.vmem [resolvable:$true] %s118
      %121 = dma.vmem_to_hbm [thread:$0]  %s119, 128, %s2, [#allocation4]
    $region17: #{tpu_custom_call.1} parent=1 // pred_fallthru
      _
    // Predicated region
    $region18: #{tpu_custom_call.1} parent=1 // pred_check
      _
    $region19: #{tpu_custom_call.1} parent=1 // pred_check_branch
      %123 = sbr.rel (0) target = $region21
    $region20: #{tpu_custom_call.1} parent=1 // pred_region
      %124 = dma.done [#allocation4], 128
    $region21: #{tpu_custom_call.1} parent=1 // pred_fallthru
      _
    %125 = vsyncpa [#allocation3], 1
    %126 = vsyncpa [#allocation4], 1

</llo_original>
